<compile_context>
chip_gen: v7x
topology: tpu7x:2x2x1
jax: 0.10.0
libtpu: 0.0.40
codegen_flags: <defaults>
</compile_context>

<pallas_src>
import jax
import jax.numpy as jnp
from jax import lax
from jax.experimental import pallas as pl
from jax.experimental.pallas import tpu as pltpu

_LANE = 128
_SUBLANE = 8


def _round_up(x, m):
    return ((x + m - 1) // m) * m


def noisy_linear_kernel(x_ref, wmu_ref, wsig_ref, epsw_ref,
                        bmu_ref, bsig_ref, epsb_ref, y_ref):
    """Fused: w = mu + sigma*eps; b = mu + sigma*eps; y = x @ w.T + b."""
    w = wmu_ref[...] + wsig_ref[...] * epsw_ref[...]     # (out_pad, in)
    b = bmu_ref[...] + bsig_ref[...] * epsb_ref[...]     # (1, out_pad)
    y = lax.dot_general(
        x_ref[...], w,
        dimension_numbers=(((1,), (1,)), ((), ())),       # x @ w.T on the MXU
        preferred_element_type=jnp.float32)
    y_ref[...] = (y + b).astype(y_ref.dtype)


def noisy_linear_forward_with_eps(x, params, eps_w, eps_b):
    """Deterministic variant: caller supplies the noise (testing / parity)."""
    w_mu, w_sigma = params["w_mu"], params["w_sigma"]
    b_mu, b_sigma = params["b_mu"], params["b_sigma"]

    B, in_f = x.shape
    out_f = w_mu.shape[0]

    # Lane-dense output padding + batch tiling.
    out_pad = _round_up(out_f, _LANE)
    tb = _LANE if B >= _LANE else _round_up(B, _SUBLANE)
    b_pad = _round_up(B, tb)

    # Zero-pad once in the wrapper (padded mu/sigma rows are 0 => padded outputs are 0).
    x_p = jnp.pad(x, ((0, b_pad - B), (0, 0)))
    w_mu_p = jnp.pad(w_mu, ((0, out_pad - out_f), (0, 0)))
    w_sig_p = jnp.pad(w_sigma, ((0, out_pad - out_f), (0, 0)))
    eps_w_p = jnp.pad(eps_w, ((0, out_pad - out_f), (0, 0)))
    b_mu_p = jnp.pad(b_mu.reshape(1, -1), ((0, 0), (0, out_pad - out_f)))
    b_sig_p = jnp.pad(b_sigma.reshape(1, -1), ((0, 0), (0, out_pad - out_f)))
    eps_b_p = jnp.pad(eps_b.reshape(1, -1), ((0, 0), (0, out_pad - out_f)))

    grid = (b_pad // tb,)
    x_spec = pl.BlockSpec((tb, in_f), lambda i: (i, 0))
    w_spec = pl.BlockSpec((out_pad, in_f), lambda i: (0, 0))
    b_spec = pl.BlockSpec((1, out_pad), lambda i: (0, 0))
    y_spec = pl.BlockSpec((tb, out_pad), lambda i: (i, 0))

    y_pad = pl.pallas_call(
        noisy_linear_kernel,
        out_shape=jax.ShapeDtypeStruct((b_pad, out_pad), jnp.float32),
        grid=grid,
        in_specs=[x_spec, w_spec, w_spec, w_spec, b_spec, b_spec, b_spec],
        out_specs=y_spec,
        compiler_params=pltpu.CompilerParams(
            dimension_semantics=("parallel",)),
    )(x_p, w_mu_p, w_sig_p, eps_w_p, b_mu_p, b_sig_p, eps_b_p)

    return y_pad[:B, :out_f]


def noisy_linear_forward(x, params, key):
    """Matches torch NoisyLinear.forward: fresh normal noise drawn per call."""
    out_f, in_f = params["w_mu"].shape
    kw, kb = jax.random.split(key)
    eps_w = jax.random.normal(kw, (out_f, in_f), dtype=jnp.float32)
    eps_b = jax.random.normal(kb, (out_f,), dtype=jnp.float32)
    return noisy_linear_forward_with_eps(x, params, eps_w, eps_b)


def init_noisy_linear(key, in_features, out_features, sigma_init=0.017):
    """Matches NoisyLinear.reset_parameters (deterministic via JAX PRNG)."""
    mu_range = 1.0 / (in_features ** 0.5)
    sig = sigma_init / (in_features ** 0.5)
    kw, kb = jax.random.split(key)
    w_mu = jax.random.uniform(kw, (out_features, in_features),
                              minval=-mu_range, maxval=mu_range,
                              dtype=jnp.float32)
    b_mu = jax.random.uniform(kb, (out_features,),
                              minval=-mu_range, maxval=mu_range,
                              dtype=jnp.float32)
    w_sigma = jnp.full((out_features, in_features), sig, dtype=jnp.float32)
    b_sigma = jnp.full((out_features,), sig, dtype=jnp.float32)
    return w_mu, w_sigma, b_mu, b_sigma


def reference_forward(x, params, eps_w, eps_b):
    """Pure-JAX reference (PyTorch F.linear semantics)."""
    w = params["w_mu"] + params["w_sigma"] * eps_w
    b = params["b_mu"] + params["b_sigma"] * eps_b
    return x @ w.T + b


if __name__ == "__main__":
    # Small shapes consistent with a DDQN NoisyNet layer: state dim 16 -> hidden 32.
    batch, in_features, out_features = 2, 16, 32

    key = jax.random.PRNGKey(0)
    kparam, kx, knoise, kew, keb = jax.random.split(key, 5)

    w_mu, w_sigma, b_mu, b_sigma = init_noisy_linear(kparam, in_features, out_features)
    params = dict(w_mu=w_mu, w_sigma=w_sigma, b_mu=b_mu, b_sigma=b_sigma)
    x = jax.random.normal(kx, (batch, in_features), dtype=jnp.float32)

    # 1) Deterministic-eps path: exact check against the pure-JAX reference.
    eps_w = jax.random.normal(kew, (out_features, in_features), dtype=jnp.float32)
    eps_b = jax.random.normal(keb, (out_features,), dtype=jnp.float32)
    y_det = jax.block_until_ready(
        noisy_linear_forward_with_eps(x, params, eps_w, eps_b))
    y_ref = reference_forward(x, params, eps_w, eps_b)
    assert y_det.shape == (batch, out_features)
    assert jnp.allclose(y_det, y_ref, atol=1e-5, rtol=1e-5), "mismatch vs JAX reference"

    # 2) Fresh-noise path (matches torch's noise-per-call forward).
    y_rng = jax.block_until_ready(noisy_linear_forward(x, params, key=knoise))
    assert y_rng.shape == (batch, out_features)
    assert bool(jnp.all(jnp.isfinite(y_rng)))
    # Noise perturbation is tiny (sigma = 0.017/sqrt(in)); the noisy output must
    # stay within a generous envelope of the noise-free (mu-only) output.
    y_mu = x @ params["w_mu"].T + params["b_mu"]
    assert bool(jnp.max(jnp.abs(y_rng - y_mu)) < 0.5)

    print("KERNEL_OK")
</pallas_src>

<mosaic_0001>
module attributes {stable_mosaic.version = 11 : i64} {
  func.func @noisy_linear_kernel(%arg0: i32, %arg1: memref<8x16xf32, #tpu.memory_space<vmem>>, %arg2: memref<128x16xf32, #tpu.memory_space<vmem>>, %arg3: memref<128x16xf32, #tpu.memory_space<vmem>>, %arg4: memref<128x16xf32, #tpu.memory_space<vmem>>, %arg5: memref<1x128xf32, #tpu.memory_space<vmem>>, %arg6: memref<1x128xf32, #tpu.memory_space<vmem>>, %arg7: memref<1x128xf32, #tpu.memory_space<vmem>>, %arg8: memref<8x128xf32, #tpu.memory_space<vmem>>) attributes {dimension_semantics = [#tpu.dimension_semantics<parallel>], iteration_bounds = array<i64: 1>, scalar_prefetch = 0 : i64, scratch_operands = 0 : i64, tpu.core_type = #tpu.core_type<tc>, window_params = [{transform_indices = @transform_0, window_bounds = array<i64: 8, 16>}, {pipeline_mode = #tpu.pipeline_mode<synchronous>, transform_indices = @transform_1, window_bounds = array<i64: 128, 16>}, {pipeline_mode = #tpu.pipeline_mode<synchronous>, transform_indices = @transform_2, window_bounds = array<i64: 128, 16>}, {pipeline_mode = #tpu.pipeline_mode<synchronous>, transform_indices = @transform_3, window_bounds = array<i64: 128, 16>}, {pipeline_mode = #tpu.pipeline_mode<synchronous>, transform_indices = @transform_4, window_bounds = array<i64: 1, 128>}, {pipeline_mode = #tpu.pipeline_mode<synchronous>, transform_indices = @transform_5, window_bounds = array<i64: 1, 128>}, {pipeline_mode = #tpu.pipeline_mode<synchronous>, transform_indices = @transform_6, window_bounds = array<i64: 1, 128>}, {transform_indices = @transform_7, window_bounds = array<i64: 8, 128>}]} {
    %c0 = arith.constant 0 : index
    %c0_0 = arith.constant 0 : index
    %0 = vector.load %arg2[%c0, %c0_0] : memref<128x16xf32, #tpu.memory_space<vmem>>, vector<128x16xf32>
    %c0_1 = arith.constant 0 : index
    %c0_2 = arith.constant 0 : index
    %1 = vector.load %arg3[%c0_1, %c0_2] : memref<128x16xf32, #tpu.memory_space<vmem>>, vector<128x16xf32>
    %c0_3 = arith.constant 0 : index
    %c0_4 = arith.constant 0 : index
    %2 = vector.load %arg4[%c0_3, %c0_4] : memref<128x16xf32, #tpu.memory_space<vmem>>, vector<128x16xf32>
    %3 = arith.mulf %1, %2 : vector<128x16xf32>
    %4 = arith.addf %0, %3 : vector<128x16xf32>
    %c0_5 = arith.constant 0 : index
    %c0_6 = arith.constant 0 : index
    %5 = vector.load %arg5[%c0_5, %c0_6] : memref<1x128xf32, #tpu.memory_space<vmem>>, vector<1x128xf32>
    %c0_7 = arith.constant 0 : index
    %c0_8 = arith.constant 0 : index
    %6 = vector.load %arg6[%c0_7, %c0_8] : memref<1x128xf32, #tpu.memory_space<vmem>>, vector<1x128xf32>
    %c0_9 = arith.constant 0 : index
    %c0_10 = arith.constant 0 : index
    %7 = vector.load %arg7[%c0_9, %c0_10] : memref<1x128xf32, #tpu.memory_space<vmem>>, vector<1x128xf32>
    %8 = arith.mulf %6, %7 : vector<1x128xf32>
    %9 = arith.addf %5, %8 : vector<1x128xf32>
    %c0_11 = arith.constant 0 : index
    %c0_12 = arith.constant 0 : index
    %10 = vector.load %arg1[%c0_11, %c0_12] : memref<8x16xf32, #tpu.memory_space<vmem>>, vector<8x16xf32>
    %cst = arith.constant dense<0.000000e+00> : vector<8x128xf32>
    %11 = tpu.matmul %10, %4, %cst {dimension_numbers = #tpu.dot_dimension_numbers<[1], [1], [0], [0], [0, 0, 1, 0], [], []>} : vector<8x16xf32>, vector<128x16xf32>, vector<8x128xf32> -> vector<8x128xf32>
    %12 = vector.broadcast %9 : vector<1x128xf32> to vector<8x128xf32>
    %13 = arith.addf %11, %12 : vector<8x128xf32>
    %c0_13 = arith.constant 0 : index
    %c0_14 = arith.constant 0 : index
    %14 = vector.load %arg8[%c0_13, %c0_14] : memref<8x128xf32, #tpu.memory_space<vmem>>, vector<8x128xf32>
    tpu.vector_store %arg8[%c0_13, %c0_14], %13 {strides = array<i32>} : memref<8x128xf32, #tpu.memory_space<vmem>>, vector<8x128xf32>,
    return
  }
  func.func @transform_0(%arg0: i32) -> (i32, i32) {
    %c0_i32 = arith.constant 0 : i32
    %c0_i32_0 = arith.constant 0 : i32
    return %arg0, %c0_i32 : i32, i32
  }
  func.func @transform_1(%arg0: i32) -> (i32, i32) {
    %c0_i32 = arith.constant 0 : i32
    %c0_i32_0 = arith.constant 0 : i32
    %c0_i32_1 = arith.constant 0 : i32
    return %c0_i32, %c0_i32_0 : i32, i32
  }
  func.func @transform_2(%arg0: i32) -> (i32, i32) {
    %c0_i32 = arith.constant 0 : i32
    %c0_i32_0 = arith.constant 0 : i32
    %c0_i32_1 = arith.constant 0 : i32
    return %c0_i32, %c0_i32_0 : i32, i32
  }
  func.func @transform_3(%arg0: i32) -> (i32, i32) {
    %c0_i32 = arith.constant 0 : i32
    %c0_i32_0 = arith.constant 0 : i32
    %c0_i32_1 = arith.constant 0 : i32
    return %c0_i32, %c0_i32_0 : i32, i32
  }
  func.func @transform_4(%arg0: i32) -> (i32, i32) {
    %c0_i32 = arith.constant 0 : i32
    %c0_i32_0 = arith.constant 0 : i32
    %c0_i32_1 = arith.constant 0 : i32
    return %c0_i32, %c0_i32_0 : i32, i32
  }
  func.func @transform_5(%arg0: i32) -> (i32, i32) {
    %c0_i32 = arith.constant 0 : i32
    %c0_i32_0 = arith.constant 0 : i32
    %c0_i32_1 = arith.constant 0 : i32
    return %c0_i32, %c0_i32_0 : i32, i32
  }
  func.func @transform_6(%arg0: i32) -> (i32, i32) {
    %c0_i32 = arith.constant 0 : i32
    %c0_i32_0 = arith.constant 0 : i32
    %c0_i32_1 = arith.constant 0 : i32
    return %c0_i32, %c0_i32_0 : i32, i32
  }
  func.func @transform_7(%arg0: i32) -> (i32, i32) {
    %c0_i32 = arith.constant 0 : i32
    %c0_i32_0 = arith.constant 0 : i32
    return %arg0, %c0_i32 : i32, i32
  }
}

</mosaic_0001>

<llo_original>
// kernel: tpu_custom_call.1
$region0: #{tpu_custom_call.1}
  #allocation0 [shape = 'u32[]', space=smem, size = 0x4, offset = 0x4, fixed_abs, tag = 'smem constant byte address 0x4 - core index']
  #allocation1 [shape = 'u32[144,128]{1,0:T(1,128)}', space=vmem, size = 0x12000, scoped, tag = 'internal scratch']
  %s0 = inlined_call_operand.vmem [shape: f32[8,16], index: 0, kind: input, shape index: {}]
  %s1 = inlined_call_operand.vmem [shape: f32[128,16], index: 1, kind: input, shape index: {}]
  %s2 = inlined_call_operand.vmem [shape: f32[128,16], index: 2, kind: input, shape index: {}]
  %s3 = inlined_call_operand.vmem [shape: f32[128,16], index: 3, kind: input, shape index: {}]
  %s4 = inlined_call_operand.vmem [shape: f32[1,128], index: 4, kind: input, shape index: {}]
  %s5 = inlined_call_operand.vmem [shape: f32[1,128], index: 5, kind: input, shape index: {}]
  %s6 = inlined_call_operand.vmem [shape: f32[1,128], index: 6, kind: input, shape index: {}]
  %s7 = inlined_call_operand.hbm [shape: f32[8,128], index: 7, kind: output, shape index: {}]
  %s8 = sld [smem:[#allocation0]]
  $region38: #{tpu_custom_call.1} parent=0
    _
  %s10 = ssub.s32 1, %s8
  %s11 = scalar_select 0, %s10, %s8
  $region1: #{tpu_custom_call.1} parent=0
    #allocation2 [shape = 'u8[4096]{0}', space=vmem, size = 0x1000, scoped, tag = 'output window, operand 0, single buffered']
    #allocation3 [shape = 's32[1]{0}', space=sflag, size = 0x4, scoped, tag = 'scoped memory for tpu_custom_call.1']
    %12 = vsyncpa [#allocation3], 0
    // Predicated region
    $region2: #{tpu_custom_call.1} parent=1 // pred_check
      _
    $region3: #{tpu_custom_call.1} parent=1 // pred_check_branch
      %14 = sbr.rel (0) target = $region5
    $region4: #{tpu_custom_call.1} parent=1 // pred_region
      _
    $region5: #{tpu_custom_call.1} parent=1 // pred_fallthru
      _
    // Predicated region
    $region6: #{tpu_custom_call.1} parent=1 // pred_check
      _
    $region7: #{tpu_custom_call.1} parent=1 // pred_check_branch
      %16 = sbr.rel (0) target = $region9
    $region8: #{tpu_custom_call.1} parent=1 // pred_region
      _
    $region9: #{tpu_custom_call.1} parent=1 // pred_fallthru
      _
    // Predicated region
    $region10: #{tpu_custom_call.1} parent=1 // pred_check
      _
    $region11: #{tpu_custom_call.1} parent=1 // pred_check_branch
      %18 = sbr.rel (0) target = $region13
    $region12: #{tpu_custom_call.1} parent=1 // pred_region
      _
    $region13: #{tpu_custom_call.1} parent=1 // pred_fallthru
      _
    // Predicated region
    $region14: #{tpu_custom_call.1} parent=1 // pred_check
      _
    $region15: #{tpu_custom_call.1} parent=1 // pred_check_branch
      %20 = sbr.rel (0) target = $region17
    $region16: #{tpu_custom_call.1} parent=1 // pred_region
      _
    $region17: #{tpu_custom_call.1} parent=1 // pred_fallthru
      _
    // Predicated region
    $region18: #{tpu_custom_call.1} parent=1 // pred_check
      _
    $region19: #{tpu_custom_call.1} parent=1 // pred_check_branch
      %22 = sbr.rel (0) target = $region21
    $region20: #{tpu_custom_call.1} parent=1 // pred_region
      _
    $region21: #{tpu_custom_call.1} parent=1 // pred_fallthru
      _
    // Predicated region
    $region22: #{tpu_custom_call.1} parent=1 // pred_check
      _
    $region23: #{tpu_custom_call.1} parent=1 // pred_check_branch
      %24 = sbr.rel (0) target = $region25
    $region24: #{tpu_custom_call.1} parent=1 // pred_region
      _
    $region25: #{tpu_custom_call.1} parent=1 // pred_fallthru
      _
    // Predicated region
    $region26: #{tpu_custom_call.1} parent=1 // pred_check
      _
    $region27: #{tpu_custom_call.1} parent=1 // pred_check_branch
      %26 = sbr.rel (0) target = $region29
    $region28: #{tpu_custom_call.1} parent=1 // pred_region
      _
    $region29: #{tpu_custom_call.1} parent=1 // pred_fallthru
      _
    %v27 = vld [vmem:[%s1] sm:$0xff]
    %v28 = vld [vmem:[%s1 + $0x8] sm:$0xff]
    %v29 = vld [vmem:[%s1 + $0x10] sm:$0xff]
    %v30 = vld [vmem:[%s1 + $0x18] sm:$0xff]
    %v31 = vld [vmem:[%s1 + $0x20] sm:$0xff]
    %v32 = vld [vmem:[%s1 + $0x28] sm:$0xff]
    %v33 = vld [vmem:[%s1 + $0x30] sm:$0xff]
    %v34 = vld [vmem:[%s1 + $0x38] sm:$0xff]
    %v35 = vld [vmem:[%s1 + $0x40] sm:$0xff]
    %v36 = vld [vmem:[%s1 + $0x48] sm:$0xff]
    %v37 = vld [vmem:[%s1 + $0x50] sm:$0xff]
    %v38 = vld [vmem:[%s1 + $0x58] sm:$0xff]
    %v39 = vld [vmem:[%s1 + $0x60] sm:$0xff]
    %v40 = vld [vmem:[%s1 + $0x68] sm:$0xff]
    %v41 = vld [vmem:[%s1 + $0x70] sm:$0xff]
    %v42 = vld [vmem:[%s1 + $0x78] sm:$0xff]
    %v43 = vld [vmem:[%s2] sm:$0xff]
    %v44 = vld [vmem:[%s2 + $0x8] sm:$0xff]
    %v45 = vld [vmem:[%s2 + $0x10] sm:$0xff]
    %v46 = vld [vmem:[%s2 + $0x18] sm:$0xff]
    %v47 = vld [vmem:[%s2 + $0x20] sm:$0xff]
    %v48 = vld [vmem:[%s2 + $0x28] sm:$0xff]
    %v49 = vld [vmem:[%s2 + $0x30] sm:$0xff]
    %v50 = vld [vmem:[%s2 + $0x38] sm:$0xff]
    %v51 = vld [vmem:[%s2 + $0x40] sm:$0xff]
    %v52 = vld [vmem:[%s2 + $0x48] sm:$0xff]
    %v53 = vld [vmem:[%s2 + $0x50] sm:$0xff]
    %v54 = vld [vmem:[%s2 + $0x58] sm:$0xff]
    %v55 = vld [vmem:[%s2 + $0x60] sm:$0xff]
    %v56 = vld [vmem:[%s2 + $0x68] sm:$0xff]
    %v57 = vld [vmem:[%s2 + $0x70] sm:$0xff]
    %v58 = vld [vmem:[%s2 + $0x78] sm:$0xff]
    %v59 = vld [vmem:[%s3] sm:$0xff]
    %v60 = vld [vmem:[%s3 + $0x8] sm:$0xff]
    %v61 = vld [vmem:[%s3 + $0x10] sm:$0xff]
    %v62 = vld [vmem:[%s3 + $0x18] sm:$0xff]
    %v63 = vld [vmem:[%s3 + $0x20] sm:$0xff]
    %v64 = vld [vmem:[%s3 + $0x28] sm:$0xff]
    %v65 = vld [vmem:[%s3 + $0x30] sm:$0xff]
    %v66 = vld [vmem:[%s3 + $0x38] sm:$0xff]
    %v67 = vld [vmem:[%s3 + $0x40] sm:$0xff]
    %v68 = vld [vmem:[%s3 + $0x48] sm:$0xff]
    %v69 = vld [vmem:[%s3 + $0x50] sm:$0xff]
    %v70 = vld [vmem:[%s3 + $0x58] sm:$0xff]
    %v71 = vld [vmem:[%s3 + $0x60] sm:$0xff]
    %v72 = vld [vmem:[%s3 + $0x68] sm:$0xff]
    %v73 = vld [vmem:[%s3 + $0x70] sm:$0xff]
    %v74 = vld [vmem:[%s3 + $0x78] sm:$0xff]
    %v75 = vmul.f32 %v43, %v59
    %v76 = vmul.f32 %v44, %v60
    %v77 = vmul.f32 %v45, %v61
    %v78 = vmul.f32 %v46, %v62
    %v79 = vmul.f32 %v47, %v63
    %v80 = vmul.f32 %v48, %v64
    %v81 = vmul.f32 %v49, %v65
    %v82 = vmul.f32 %v50, %v66
    %v83 = vmul.f32 %v51, %v67
    %v84 = vmul.f32 %v52, %v68
    %v85 = vmul.f32 %v53, %v69
    %v86 = vmul.f32 %v54, %v70
    %v87 = vmul.f32 %v55, %v71
    %v88 = vmul.f32 %v56, %v72
    %v89 = vmul.f32 %v57, %v73
    %v90 = vmul.f32 %v58, %v74
    %v91 = vadd.f32 %v27, %v75
    %v92 = vadd.f32 %v28, %v76
    %v93 = vadd.f32 %v29, %v77
    %v94 = vadd.f32 %v30, %v78
    %v95 = vadd.f32 %v31, %v79
    %v96 = vadd.f32 %v32, %v80
    %v97 = vadd.f32 %v33, %v81
    %v98 = vadd.f32 %v34, %v82
    %v99 = vadd.f32 %v35, %v83
    %v100 = vadd.f32 %v36, %v84
    %v101 = vadd.f32 %v37, %v85
    %v102 = vadd.f32 %v38, %v86
    %v103 = vadd.f32 %v39, %v87
    %v104 = vadd.f32 %v40, %v88
    %v105 = vadd.f32 %v41, %v89
    %v106 = vadd.f32 %v42, %v90
    %v107 = vld [vmem:[%s4] sm:$0x1]
    %v108 = vld [vmem:[%s5] sm:$0x1]
    %v109 = vld [vmem:[%s6] sm:$0x1]
    %v110 = vmul.f32 %v108, %v109
    %v111 = vadd.f32 %v107, %v110
    %v112 = vld [vmem:[%s0] sm:$0xff]
    %v114 = vlaneseq
    %v115 = vshrl.u32 %v114, 7
    %v116 = vsub.s32 0, %v115
    %v117 = vrot.slane %v111, %v116
    %vm119 = vcmask 130048
    %v121 = vsel %vm119, %v112, 0
    %v124 = vsel %vm119, %v91, 0
    %v127 = vsel %vm119, %v92, 0
    %v130 = vsel %vm119, %v93, 0
    %v133 = vsel %vm119, %v94, 0
    %v136 = vsel %vm119, %v95, 0
    %v139 = vsel %vm119, %v96, 0
    %v142 = vsel %vm119, %v97, 0
    %v145 = vsel %vm119, %v98, 0
    %v148 = vsel %vm119, %v99, 0
    %v151 = vsel %vm119, %v100, 0
    %v154 = vsel %vm119, %v101, 0
    %v157 = vsel %vm119, %v102, 0
    %v160 = vsel %vm119, %v103, 0
    %v163 = vsel %vm119, %v104, 0
    %v166 = vsel %vm119, %v105, 0
    %v169 = vsel %vm119, %v106, 0
    %171 = vmatprep.subr.mxu0 0.0
    %172 = vmatpush1.xpose.msra.mxu0 %v124
    %173 = vmatprep.subr.mxu0 0.0
    %174 = vmatpush1.xpose.msra.mxu0 %v127
    %175 = vmatprep.subr.mxu0 0.0
    %176 = vmatpush1.xpose.msra.mxu0 %v130
    %177 = vmatprep.subr.mxu0 0.0
    %178 = vmatpush1.xpose.msra.mxu0 %v133
    %179 = vmatprep.subr.mxu0 0.0
    %180 = vmatpush1.xpose.msra.mxu0 %v136
    %181 = vmatprep.subr.mxu0 0.0
    %182 = vmatpush1.xpose.msra.mxu0 %v139
    %183 = vmatprep.subr.mxu0 0.0
    %184 = vmatpush1.xpose.msra.mxu0 %v142
    %185 = vmatprep.subr.mxu0 0.0
    %186 = vmatpush1.xpose.msra.mxu0 %v145
    %187 = vmatprep.subr.mxu0 0.0
    %188 = vmatpush1.xpose.msra.mxu0 %v148
    %189 = vmatprep.subr.mxu0 0.0
    %190 = vmatpush1.xpose.msra.mxu0 %v151
    %191 = vmatprep.subr.mxu0 0.0
    %192 = vmatpush1.xpose.msra.mxu0 %v154
    %193 = vmatprep.subr.mxu0 0.0
    %194 = vmatpush1.xpose.msra.mxu0 %v157
    %195 = vmatprep.subr.mxu0 0.0
    %196 = vmatpush1.xpose.msra.mxu0 %v160
    %197 = vmatprep.subr.mxu0 0.0
    %198 = vmatpush1.xpose.msra.mxu0 %v163
    %199 = vmatprep.subr.mxu0 0.0
    %200 = vmatpush1.xpose.msra.mxu0 %v166
    %201 = vmatprep.subr.mxu0 0.0
    %202 = vmatpush1.xpose.msra.mxu0 %v169
    %203 = vmatprep.subr.mxu0 0.0
    %204 = vmatpush1.xpose.msra.mxu0 0.0
    %205 = vmatprep.subr.mxu0 0.0
    %206 = vmatpush1.xpose.msra.mxu0 0.0
    %207 = vmatprep.subr.mxu0 0.0
    %208 = vmatpush1.xpose.msra.mxu0 0.0
    %209 = vmatprep.subr.mxu0 0.0
    %210 = vmatpush1.xpose.msra.mxu0 0.0
    %211 = vmatprep.subr.mxu0 0.0
    %212 = vmatpush1.xpose.msra.mxu0 0.0
    %213 = vmatprep.subr.mxu0 0.0
    %214 = vmatpush1.xpose.msra.mxu0 0.0
    %215 = vmatprep.subr.mxu0 0.0
    %216 = vmatpush1.xpose.msra.mxu0 0.0
    %217 = vmatprep.subr.mxu0 0.0
    %218 = vmatpush1.xpose.msra.mxu0 0.0
    %219 = vmatprep.subr.mxu0 0.0
    %220 = vmatpush1.xpose.msra.mxu0 0.0
    %221 = vmatprep.subr.mxu0 0.0
    %222 = vmatpush1.xpose.msra.mxu0 0.0
    %223 = vmatprep.subr.mxu0 0.0
    %224 = vmatpush1.xpose.msra.mxu0 0.0
    %225 = vmatprep.subr.mxu0 0.0
    %226 = vmatpush1.xpose.msra.mxu0 0.0
    %227 = vmatprep.subr.mxu0 0.0
    %228 = vmatpush1.xpose.msra.mxu0 0.0
    %229 = vmatprep.subr.mxu0 0.0
    %230 = vmatpush1.xpose.msra.mxu0 0.0
    %231 = vmatprep.subr.mxu0 0.0
    %232 = vmatpush1.xpose.msra.mxu0 0.0
    %233 = vmatprep.subr.mxu0 0.0
    %234 = vmatpush1.xpose.msra.mxu0 0.0
    %235 = vmatprep.mubr.f32.mxu0 0.0
    %236 = vmatmul.mubr.f32.gmra.mrb[0].mxu0 %v121
    %v237 = vpop.f32.mrb[0].mxu0
    %v238 = vadd.f32 %v117, %v237
    %v239 = vpop.f32.mrb[0].mxu0
    %240 = vdwg.mxu0
    %241 = vst [vmem:[#allocation2] sm:$0xff] %v238
    // Predicated region
    $region30: #{tpu_custom_call.1} parent=1 // pred_check
      _
    $region31: #{tpu_custom_call.1} parent=1 // pred_check_branch
      %243 = sbr.rel (0) target = $region33
    $region32: #{tpu_custom_call.1} parent=1 // pred_region
      %s245 = ssub.s32 128, 128
      %246 = vsyncadd [#allocation3], %s245
      %s248 = sshll.u32 [#allocation2], 4
      %s249 = int_to_ptr.vmem [resolvable:$true] %s248
      %251 = dma.vmem_to_hbm [thread:$0]  %s249, 128, %s7, [#allocation3]
    $region33: #{tpu_custom_call.1} parent=1 // pred_fallthru
      _
    // Predicated region
    $region34: #{tpu_custom_call.1} parent=1 // pred_check
      _
    $region35: #{tpu_custom_call.1} parent=1 // pred_check_branch
      %253 = sbr.rel (0) target = $region37
    $region36: #{tpu_custom_call.1} parent=1 // pred_region
      %254 = dma.done [#allocation3], 128
    $region37: #{tpu_custom_call.1} parent=1 // pred_fallthru
      _
    %255 = vsyncpa [#allocation3], 1

</llo_original>
